<compile_context>
chip_gen: v6e
topology: v6e:2x2x1
jax: 0.10.0
libtpu: 0.0.40
codegen_flags: <defaults>
</compile_context>

<pallas_src>
import jax
import jax.numpy as jnp
import numpy as np
from jax.experimental import pallas as pl
from jax.experimental.pallas import tpu as pltpu

INPUT_DIM = 66
QUERY_DIM = 3
HIDDEN_DIM = 64
OUTPUT_DIM = 3
DEC_HIDDEN = 64

# x | query | zero pad | constant-1 bias lane, 16-aligned K for bf16 sublanes.
XQ_PAD = 80
BIAS_LANE = XQ_PAD - 1

# MXU operand dtype (f32 accumulation via preferred_element_type).
MXU_DTYPE = jnp.bfloat16


# ----------------------------------------------------------------------------
# Pallas kernel: one GRU+decoder step per grid iteration, h carried in scratch.
# ----------------------------------------------------------------------------
def _gru_gates(gi, gh, h):
    """PyTorch GRU gate order r, z, n; gi includes b_ih, gh includes b_hh."""
    H = HIDDEN_DIM
    r = jax.nn.sigmoid(gi[:, 0:H] + gh[:, 0:H])
    z = jax.nn.sigmoid(gi[:, H:2 * H] + gh[:, H:2 * H])
    n = jnp.tanh(gi[:, 2 * H:3 * H] + r * gh[:, 2 * H:3 * H])
    return (1.0 - z) * n + z * h


def zsla_kernel(xq_ref, hinit_ref, wx_ref, wh_ref, wi1_ref, wd_ref, b_ref,
                o_ref, h_sc):
    H = HIDDEN_DIM
    t = pl.program_id(0)

    # Initialize the VMEM-resident hidden state at the first time step only.
    @pl.when(t == 0)
    def _():
        h_sc[...] = hinit_ref[...]

    def mxu(a, w):
        return jnp.dot(a, w, preferred_element_type=jnp.float32)

    xq = xq_ref[0].astype(MXU_DTYPE)      # [B, 80]  (cast once)
    h0 = h_sc[0]                          # [B, 64]  f32
    h1 = h_sc[1]                          # [B, 64]  f32

    # (1) xq dot: gi0 (b_ih_l0 folded via bias lane) | decoder x part (b_dec1 folded)
    gx = mxu(xq, wx_ref[...])                                        # [B, 256]

    # (2) block-diagonal hidden dot: gh0 | gh1 (old h only) + (b_hh0 | b_hh1)
    h01 = jnp.concatenate([h0, h1], axis=-1).astype(MXU_DTYPE)       # [B, 128]
    gh = mxu(h01, wh_ref[...]) + b_ref[0:1, :]                       # [B, 384]

    # GRU layer 0
    h0n = _gru_gates(gx[:, 0:3 * H], gh[:, 0:3 * H], h0)

    # (3) GRU layer 1 input dot (+ b_ih_l1)
    gi1 = mxu(h0n.astype(MXU_DTYPE), wi1_ref[...]) + b_ref[1:2, 0:3 * H]
    h1n = _gru_gates(gi1, gh[:, 3 * H:6 * H], h1)

    # (4) decoder layer 1: h part (+ x/query part & b_dec1 already in gx), ReLU
    d = mxu(h1n.astype(MXU_DTYPE), wd_ref[0:H, :]) + gx[:, 3 * H:]
    d = jnp.maximum(d, 0.0)

    # (5) decoder layer 2 (output lanes padded 3 -> 64) + b_dec2
    y = mxu(d.astype(MXU_DTYPE), wd_ref[H:2 * H, :]) + b_ref[2:3, 0:DEC_HIDDEN]

    # Carry hidden state to the next grid step; one lane-dense 192-lane store.
    h_sc[0] = h0n
    h_sc[1] = h1n
    o_ref[0] = jnp.concatenate([h0n, h1n, y], axis=-1)


# ----------------------------------------------------------------------------
# Parameter construction (deterministic, PyTorch-style uniform init).
# ----------------------------------------------------------------------------
def init_params(key):
    bound = 1.0 / np.sqrt(HIDDEN_DIM)
    dec1_bound = 1.0 / np.sqrt(HIDDEN_DIM + QUERY_DIM)
    dec2_bound = 1.0 / np.sqrt(DEC_HIDDEN)

    def u(k, shape, b):
        return jax.random.uniform(k, shape, jnp.float32, -b, b)

    ks = jax.random.split(key, 16)
    return {
        "w_ih_l0": u(ks[0], (3 * HIDDEN_DIM, INPUT_DIM), bound),
        "w_hh_l0": u(ks[1], (3 * HIDDEN_DIM, HIDDEN_DIM), bound),
        "b_ih_l0": u(ks[2], (3 * HIDDEN_DIM,), bound),
        "b_hh_l0": u(ks[3], (3 * HIDDEN_DIM,), bound),
        "w_ih_l1": u(ks[4], (3 * HIDDEN_DIM, HIDDEN_DIM), bound),
        "w_hh_l1": u(ks[5], (3 * HIDDEN_DIM, HIDDEN_DIM), bound),
        "b_ih_l1": u(ks[6], (3 * HIDDEN_DIM,), bound),
        "b_hh_l1": u(ks[7], (3 * HIDDEN_DIM,), bound),
        "w_dec1": u(ks[8], (DEC_HIDDEN, HIDDEN_DIM + QUERY_DIM), dec1_bound),
        "b_dec1": u(ks[9], (DEC_HIDDEN,), dec1_bound),
        "w_dec2": u(ks[10], (OUTPUT_DIM, DEC_HIDDEN), dec2_bound),
        "b_dec2": u(ks[11], (OUTPUT_DIM,), dec2_bound),
    }


def prepare_params(params, mxu_dtype=MXU_DTYPE):
    """One-time packing of PyTorch-layout weights into kernel slabs."""
    H = HIDDEN_DIM
    f32 = jnp.float32

    # xq slab [80, 256]: cols 0:192 -> layer-0 gi (r|z|n), cols 192:256 -> decoder-1
    # x part.  Query lanes contribute nothing to gi0; x lanes contribute nothing to
    # the decoder.  Bias lane 79 carries b_ih_l0 / b_dec1 (MXU eats the bias adds).
    w_x = jnp.zeros((XQ_PAD, 3 * H + DEC_HIDDEN), f32)
    w_x = w_x.at[0:INPUT_DIM, 0:3 * H].set(params["w_ih_l0"].T)
    w_x = w_x.at[INPUT_DIM:INPUT_DIM + QUERY_DIM, 3 * H:].set(params["w_dec1"][:, H:].T)
    w_x = w_x.at[BIAS_LANE, 0:3 * H].set(params["b_ih_l0"])
    w_x = w_x.at[BIAS_LANE, 3 * H:].set(params["b_dec1"])

    # Block-diagonal hidden slab [128, 384]: [[w_hh0, 0], [0, w_hh1]].
    w_h = jnp.zeros((2 * H, 6 * H), f32)
    w_h = w_h.at[0:H, 0:3 * H].set(params["w_hh_l0"].T)
    w_h = w_h.at[H:, 3 * H:].set(params["w_hh_l1"].T)

    # Layer-1 input weights [64, 192].
    w_i1 = params["w_ih_l1"].T

    # Decoder slab [128, 64]: rows 0:64 = W1 (h part).T, rows 64:128 = W2.T padded.
    w_d = jnp.zeros((2 * H, DEC_HIDDEN), f32)
    w_d = w_d.at[0:H, :].set(params["w_dec1"][:, 0:H].T)
    w_d = w_d.at[H:, 0:OUTPUT_DIM].set(params["w_dec2"].T)

    # Remaining (f32) biases: row0 = b_hh0|b_hh1, row1 = b_ih1, row2 = b_dec2 pad.
    bias = jnp.zeros((3, 6 * H), f32)
    bias = bias.at[0, 0:3 * H].set(params["b_hh_l0"])
    bias = bias.at[0, 3 * H:].set(params["b_hh_l1"])
    bias = bias.at[1, 0:3 * H].set(params["b_ih_l1"])
    bias = bias.at[2, 0:OUTPUT_DIM].set(params["b_dec2"])

    return {"w_x": w_x.astype(mxu_dtype), "w_h": w_h.astype(mxu_dtype),
            "w_i1": w_i1.astype(mxu_dtype), "w_d": w_d.astype(mxu_dtype),
            "bias": bias}


# ----------------------------------------------------------------------------
# Wrappers: sequence path (time loop in-kernel) and single-step module API.
# ----------------------------------------------------------------------------
def _forward_seq_impl(packed, x_seq, q_seq, h):
    T, B, _ = x_seq.shape
    H = HIDDEN_DIM

    # Pack x|query|0-pad|1 once for the whole sequence (fused inside this jit).
    pad = jnp.zeros((T, B, XQ_PAD - INPUT_DIM - QUERY_DIM - 1), jnp.float32)
    one = jnp.ones((T, B, 1), jnp.float32)
    xq = jnp.concatenate(
        [x_seq.astype(jnp.float32), q_seq.astype(jnp.float32), pad, one], axis=-1)
    h = h.astype(jnp.float32)

    const2 = lambda t: (0, 0)
    slab = pl.pallas_call(
        zsla_kernel,
        grid=(T,),
        out_shape=jax.ShapeDtypeStruct((T, B, 3 * H), jnp.float32),
        in_specs=[
            pl.BlockSpec((1, B, XQ_PAD), lambda t: (t, 0, 0)),   # streamed per step
            pl.BlockSpec((2, B, H), lambda t: (0, 0, 0)),        # initial hidden
            pl.BlockSpec((XQ_PAD, 3 * H + DEC_HIDDEN), const2),  # weights: DMA'd once,
            pl.BlockSpec((2 * H, 6 * H), const2),                # VMEM-resident across T
            pl.BlockSpec((H, 3 * H), const2),
            pl.BlockSpec((2 * H, DEC_HIDDEN), const2),
            pl.BlockSpec((3, 6 * H), const2),
        ],
        out_specs=pl.BlockSpec((1, B, 3 * H), lambda t: (t, 0, 0)),
        scratch_shapes=[pltpu.VMEM((2, B, H), jnp.float32)],     # carried hidden state
        compiler_params=pltpu.CompilerParams(
            dimension_semantics=("arbitrary",)),                 # sequential recurrence
    )(xq, h, packed["w_x"], packed["w_h"], packed["w_i1"], packed["w_d"],
      packed["bias"])

    out_seq = slab[:, :, 2 * H:2 * H + OUTPUT_DIM]               # [T, B, 3]
    new_h = jnp.stack([slab[-1, :, 0:H], slab[-1, :, H:2 * H]], axis=0)
    return out_seq, new_h


zsla_forward_seq = jax.jit(_forward_seq_impl)


@jax.jit
def _step_impl(packed, x, query, h):
    out_seq, new_h = _forward_seq_impl(packed, x[None], query[None], h)
    return out_seq[0], new_h


def zsla_forward(packed, x, query, h=None):
    """Single-step forward matching ZSLAModel.forward(x, query, h)."""
    if h is None:
        h = jnp.zeros((2, x.shape[0], HIDDEN_DIM), jnp.float32)
    return _step_impl(packed, x, query, h)


# ----------------------------------------------------------------------------
# Pure-JAX reference (PyTorch GRU semantics) for verification.
# mxu_dtype=bf16 mirrors the kernel's MXU operand precision (incl. the bf16
# rounding of the two biases folded into the bf16 weight slab).
# ----------------------------------------------------------------------------
def zsla_reference(params, x, query, h, mxu_dtype=jnp.float32):
    H = HIDDEN_DIM

    def mm(a, w):
        return jnp.dot(a.astype(mxu_dtype), w.T.astype(mxu_dtype),
                       preferred_element_type=jnp.float32)

    def rnd(b):  # biases that the kernel folds into bf16 weight rows
        return b.astype(mxu_dtype).astype(jnp.float32)

    def gru_cell(xx, hh, w_ih, w_hh, b_ih, b_hh):
        gi = mm(xx, w_ih) + b_ih
        gh = mm(hh, w_hh) + b_hh
        r = jax.nn.sigmoid(gi[:, :H] + gh[:, :H])
        z = jax.nn.sigmoid(gi[:, H:2 * H] + gh[:, H:2 * H])
        n = jnp.tanh(gi[:, 2 * H:] + r * gh[:, 2 * H:])
        return (1.0 - z) * n + z * hh

    h0 = gru_cell(x, h[0], params["w_ih_l0"], params["w_hh_l0"],
                  rnd(params["b_ih_l0"]), params["b_hh_l0"])
    h1 = gru_cell(h0, h[1], params["w_ih_l1"], params["w_hh_l1"],
                  params["b_ih_l1"], params["b_hh_l1"])
    cat = jnp.concatenate([h1, query], axis=1)
    d = jnp.maximum(mm(cat, params["w_dec1"]) + rnd(params["b_dec1"]), 0.0)
    out = mm(d, params["w_dec2"]) + params["b_dec2"]
    return out, jnp.stack([h0, h1], axis=0)


def zsla_reference_seq(params, x_seq, q_seq, h, mxu_dtype=jnp.float32):
    outs, hh = [], h
    for t in range(x_seq.shape[0]):
        o, hh = zsla_reference(params, x_seq[t], q_seq[t], hh, mxu_dtype)
        outs.append(o)
    return jnp.stack(outs, axis=0), hh


if __name__ == "__main__":
    key = jax.random.PRNGKey(0)
    k_param, k_x, k_q, k_h = jax.random.split(key, 4)

    B, T = 2, 8
    params = init_params(k_param)
    packed = prepare_params(params)   # one-time weight packing

    x_seq = jax.random.normal(k_x, (T, B, INPUT_DIM), jnp.float32)
    q_seq = jax.random.normal(k_q, (T, B, QUERY_DIM), jnp.float32)
    h0 = jax.random.normal(k_h, (2, B, HIDDEN_DIM), jnp.float32) * 0.1

    # --- single step (exactly the module's forward) ---
    out, new_h = zsla_forward(packed, x_seq[0], q_seq[0], h0)
    jax.block_until_ready((out, new_h))
    assert out.shape == (B, OUTPUT_DIM) and new_h.shape == (2, B, HIDDEN_DIM)

    ref_out_bf, ref_h_bf = zsla_reference(params, x_seq[0], q_seq[0], h0,
                                          mxu_dtype=MXU_DTYPE)
    np.testing.assert_allclose(np.asarray(out), np.asarray(ref_out_bf),
                               rtol=2e-3, atol=2e-3)
    np.testing.assert_allclose(np.asarray(new_h), np.asarray(ref_h_bf),
                               rtol=2e-3, atol=2e-3)

    ref_out, ref_h = zsla_reference(params, x_seq[0], q_seq[0], h0,
                                    mxu_dtype=jnp.float32)
    np.testing.assert_allclose(np.asarray(out), np.asarray(ref_out),
                               rtol=3e-2, atol=3e-2)
    np.testing.assert_allclose(np.asarray(new_h), np.asarray(ref_h),
                               rtol=3e-2, atol=3e-2)

    # --- sequence path: time loop inside the kernel grid ---
    out_seq, h_T = zsla_forward_seq(packed, x_seq, q_seq, h0)
    jax.block_until_ready((out_seq, h_T))
    assert out_seq.shape == (T, B, OUTPUT_DIM) and h_T.shape == (2, B, HIDDEN_DIM)

    # Tight check: reference stepped T times with the same bf16 MXU operands.
    ro_bf, rh_bf = zsla_reference_seq(params, x_seq, q_seq, h0, mxu_dtype=MXU_DTYPE)
    np.testing.assert_allclose(np.asarray(out_seq), np.asarray(ro_bf),
                               rtol=3e-3, atol=3e-3)
    np.testing.assert_allclose(np.asarray(h_T), np.asarray(rh_bf),
                               rtol=3e-3, atol=3e-3)

    # Semantic check: full-f32 PyTorch-GRU reference (bf16 operand drift only).
    ro32, rh32 = zsla_reference_seq(params, x_seq, q_seq, h0, mxu_dtype=jnp.float32)
    np.testing.assert_allclose(np.asarray(out_seq), np.asarray(ro32),
                               rtol=5e-2, atol=5e-2)
    np.testing.assert_allclose(np.asarray(h_T), np.asarray(rh32),
                               rtol=5e-2, atol=5e-2)

    # h=None path (PyTorch: zero initial hidden state).
    out0, new_h0 = zsla_forward(packed, x_seq[0], q_seq[0], None)
    jax.block_until_ready((out0, new_h0))
    assert out0.shape == (B, OUTPUT_DIM) and new_h0.shape == (2, B, HIDDEN_DIM)

    print("KERNEL_OK")
</pallas_src>

<mosaic_0001>
module attributes {stable_mosaic.version = 11 : i64} {
  func.func @zsla_kernel(%arg0: i32, %arg1: memref<1x2x80xf32, #tpu.memory_space<vmem>>, %arg2: memref<2x2x64xf32, #tpu.memory_space<vmem>>, %arg3: memref<80x256xbf16, #tpu.memory_space<vmem>>, %arg4: memref<128x384xbf16, #tpu.memory_space<vmem>>, %arg5: memref<64x192xbf16, #tpu.memory_space<vmem>>, %arg6: memref<128x64xbf16, #tpu.memory_space<vmem>>, %arg7: memref<3x384xf32, #tpu.memory_space<vmem>>, %arg8: memref<1x2x192xf32, #tpu.memory_space<vmem>>, %arg9: memref<2x2x64xf32, #tpu.memory_space<vmem>>) attributes {dimension_semantics = [#tpu.dimension_semantics<arbitrary>], iteration_bounds = array<i64: 1>, scalar_prefetch = 0 : i64, scratch_operands = 1 : i64, tpu.core_type = #tpu.core_type<tc>, window_params = [{transform_indices = @transform_0, window_bounds = array<i64: 1, 2, 80>}, {pipeline_mode = #tpu.pipeline_mode<synchronous>, transform_indices = @transform_1, window_bounds = array<i64: 2, 2, 64>}, {pipeline_mode = #tpu.pipeline_mode<synchronous>, transform_indices = @transform_2, window_bounds = array<i64: 80, 256>}, {pipeline_mode = #tpu.pipeline_mode<synchronous>, transform_indices = @transform_3, window_bounds = array<i64: 128, 384>}, {pipeline_mode = #tpu.pipeline_mode<synchronous>, transform_indices = @transform_4, window_bounds = array<i64: 64, 192>}, {pipeline_mode = #tpu.pipeline_mode<synchronous>, transform_indices = @transform_5, window_bounds = array<i64: 128, 64>}, {pipeline_mode = #tpu.pipeline_mode<synchronous>, transform_indices = @transform_6, window_bounds = array<i64: 3, 384>}, {transform_indices = @transform_7, window_bounds = array<i64: 1, 2, 192>}]} {
    %c0_i32 = arith.constant 0 : i32
    %0 = arith.cmpi eq, %arg0, %c0_i32 : i32
    %1 = arith.extui %0 : i1 to i32
    %c0_i32_0 = arith.constant 0 : i32
    %2 = arith.cmpi ne, %1, %c0_i32_0 : i32
    scf.if %2 {
      %c0_42 = arith.constant 0 : index
      %c0_43 = arith.constant 0 : index
      %c0_44 = arith.constant 0 : index
      %103 = vector.load %arg2[%c0_42, %c0_43, %c0_44] : memref<2x2x64xf32, #tpu.memory_space<vmem>>, vector<2x2x64xf32>
      %c0_45 = arith.constant 0 : index
      %c0_46 = arith.constant 0 : index
      %c0_47 = arith.constant 0 : index
      %104 = vector.load %arg9[%c0_45, %c0_46, %c0_47] : memref<2x2x64xf32, #tpu.memory_space<vmem>>, vector<2x2x64xf32>
      tpu.vector_store %arg9[%c0_45, %c0_46, %c0_47], %103 {strides = array<i32>} : memref<2x2x64xf32, #tpu.memory_space<vmem>>, vector<2x2x64xf32>,
    } else {
    }
    %c0 = arith.constant 0 : index
    %c0_1 = arith.constant 0 : index
    %c0_2 = arith.constant 0 : index
    %3 = vector.load %arg1[%c0, %c0_1, %c0_2] : memref<1x2x80xf32, #tpu.memory_space<vmem>>, vector<1x2x80xf32>
    %4 = vector.shape_cast %3 : vector<1x2x80xf32> to vector<2x80xf32>
    %5 = arith.truncf %4 : vector<2x80xf32> to vector<2x80xbf16>
    %c0_3 = arith.constant 0 : index
    %c0_4 = arith.constant 0 : index
    %c0_5 = arith.constant 0 : index
    %6 = vector.load %arg9[%c0_3, %c0_4, %c0_5] : memref<2x2x64xf32, #tpu.memory_space<vmem>>, vector<1x2x64xf32>
    %7 = vector.shape_cast %6 : vector<1x2x64xf32> to vector<2x64xf32>
    %c1 = arith.constant 1 : index
    %c0_6 = arith.constant 0 : index
    %c0_7 = arith.constant 0 : index
    %8 = vector.load %arg9[%c1, %c0_6, %c0_7] : memref<2x2x64xf32, #tpu.memory_space<vmem>>, vector<1x2x64xf32>
    %9 = vector.shape_cast %8 : vector<1x2x64xf32> to vector<2x64xf32>
    %c0_8 = arith.constant 0 : index
    %c0_9 = arith.constant 0 : index
    %10 = vector.load %arg3[%c0_8, %c0_9] : memref<80x256xbf16, #tpu.memory_space<vmem>>, vector<80x256xbf16>
    %cst = arith.constant dense<0.000000e+00> : vector<2x256xf32>
    %11 = tpu.matmul %5, %10, %cst {dimension_numbers = #tpu.dot_dimension_numbers<[1], [0], [0], [1], [0, 0, 1, 1], [], []>} : vector<2x80xbf16>, vector<80x256xbf16>, vector<2x256xf32> -> vector<2x256xf32>
    %12 = tpu.concatenate %7, %9 in 1 : vector<2x64xf32>, vector<2x64xf32> -> vector<2x128xf32>
    %13 = arith.truncf %12 : vector<2x128xf32> to vector<2x128xbf16>
    %c0_10 = arith.constant 0 : index
    %c0_11 = arith.constant 0 : index
    %14 = vector.load %arg4[%c0_10, %c0_11] : memref<128x384xbf16, #tpu.memory_space<vmem>>, vector<128x384xbf16>
    %cst_12 = arith.constant dense<0.000000e+00> : vector<2x384xf32>
    %15 = tpu.matmul %13, %14, %cst_12 {dimension_numbers = #tpu.dot_dimension_numbers<[1], [0], [0], [1], [0, 0, 1, 1], [], []>} : vector<2x128xbf16>, vector<128x384xbf16>, vector<2x384xf32> -> vector<2x384xf32>
    %c0_13 = arith.constant 0 : index
    %c0_14 = arith.constant 0 : index
    %16 = vector.load %arg7[%c0_13, %c0_14] : memref<3x384xf32, #tpu.memory_space<vmem>>, vector<1x384xf32>
    %17 = vector.broadcast %16 : vector<1x384xf32> to vector<2x384xf32>
    %18 = arith.addf %15, %17 : vector<2x384xf32>
    %19 = vector.extract_strided_slice %11 {offsets = [0, 0], sizes = [2, 192], strides = [1, 1]} : vector<2x256xf32> to vector<2x192xf32>
    %20 = vector.extract_strided_slice %18 {offsets = [0, 0], sizes = [2, 192], strides = [1, 1]} : vector<2x384xf32> to vector<2x192xf32>
    %21 = vector.extract_strided_slice %19 {offsets = [0, 0], sizes = [2, 64], strides = [1, 1]} : vector<2x192xf32> to vector<2x64xf32>
    %22 = vector.extract_strided_slice %20 {offsets = [0, 0], sizes = [2, 64], strides = [1, 1]} : vector<2x192xf32> to vector<2x64xf32>
    %23 = arith.addf %21, %22 : vector<2x64xf32>
    %24 = arith.negf %23 : vector<2x64xf32>
    %25 = math.exp %24 : vector<2x64xf32>
    %cst_15 = arith.constant 1.000000e+00 : f32
    %26 = vector.broadcast %cst_15 : f32 to vector<2x64xf32>
    %27 = arith.addf %26, %25 : vector<2x64xf32>
    %28 = arith.divf %26, %27 : vector<2x64xf32>
    %29 = vector.extract_strided_slice %19 {offsets = [0, 64], sizes = [2, 64], strides = [1, 1]} : vector<2x192xf32> to vector<2x64xf32>
    %30 = vector.extract_strided_slice %20 {offsets = [0, 64], sizes = [2, 64], strides = [1, 1]} : vector<2x192xf32> to vector<2x64xf32>
    %31 = arith.addf %29, %30 : vector<2x64xf32>
    %32 = arith.negf %31 : vector<2x64xf32>
    %33 = math.exp %32 : vector<2x64xf32>
    %cst_16 = arith.constant 1.000000e+00 : f32
    %34 = vector.broadcast %cst_16 : f32 to vector<2x64xf32>
    %35 = arith.addf %34, %33 : vector<2x64xf32>
    %36 = arith.divf %34, %35 : vector<2x64xf32>
    %37 = vector.extract_strided_slice %19 {offsets = [0, 128], sizes = [2, 64], strides = [1, 1]} : vector<2x192xf32> to vector<2x64xf32>
    %38 = vector.extract_strided_slice %20 {offsets = [0, 128], sizes = [2, 64], strides = [1, 1]} : vector<2x192xf32> to vector<2x64xf32>
    %39 = arith.mulf %28, %38 : vector<2x64xf32>
    %40 = arith.addf %37, %39 : vector<2x64xf32>
    %41 = math.tanh %40 : vector<2x64xf32>
    %cst_17 = arith.constant 1.000000e+00 : f32
    %42 = vector.broadcast %cst_17 : f32 to vector<2x64xf32>
    %43 = arith.subf %42, %36 : vector<2x64xf32>
    %44 = arith.mulf %43, %41 : vector<2x64xf32>
    %45 = arith.mulf %36, %7 : vector<2x64xf32>
    %46 = arith.addf %44, %45 : vector<2x64xf32>
    %47 = arith.truncf %46 : vector<2x64xf32> to vector<2x64xbf16>
    %c0_18 = arith.constant 0 : index
    %c0_19 = arith.constant 0 : index
    %48 = vector.load %arg5[%c0_18, %c0_19] : memref<64x192xbf16, #tpu.memory_space<vmem>>, vector<64x192xbf16>
    %cst_20 = arith.constant dense<0.000000e+00> : vector<2x192xf32>
    %49 = tpu.matmul %47, %48, %cst_20 {dimension_numbers = #tpu.dot_dimension_numbers<[1], [0], [0], [1], [0, 0, 1, 1], [], []>} : vector<2x64xbf16>, vector<64x192xbf16>, vector<2x192xf32> -> vector<2x192xf32>
    %c1_21 = arith.constant 1 : index
    %c0_22 = arith.constant 0 : index
    %50 = vector.load %arg7[%c1_21, %c0_22] : memref<3x384xf32, #tpu.memory_space<vmem>>, vector<1x192xf32>
    %51 = vector.broadcast %50 : vector<1x192xf32> to vector<2x192xf32>
    %52 = arith.addf %49, %51 : vector<2x192xf32>
    %53 = vector.extract_strided_slice %18 {offsets = [0, 192], sizes = [2, 192], strides = [1, 1]} : vector<2x384xf32> to vector<2x192xf32>
    %54 = vector.extract_strided_slice %52 {offsets = [0, 0], sizes = [2, 64], strides = [1, 1]} : vector<2x192xf32> to vector<2x64xf32>
    %55 = vector.extract_strided_slice %53 {offsets = [0, 0], sizes = [2, 64], strides = [1, 1]} : vector<2x192xf32> to vector<2x64xf32>
    %56 = arith.addf %54, %55 : vector<2x64xf32>
    %57 = arith.negf %56 : vector<2x64xf32>
    %58 = math.exp %57 : vector<2x64xf32>
    %cst_23 = arith.constant 1.000000e+00 : f32
    %59 = vector.broadcast %cst_23 : f32 to vector<2x64xf32>
    %60 = arith.addf %59, %58 : vector<2x64xf32>
    %61 = arith.divf %59, %60 : vector<2x64xf32>
    %62 = vector.extract_strided_slice %52 {offsets = [0, 64], sizes = [2, 64], strides = [1, 1]} : vector<2x192xf32> to vector<2x64xf32>
    %63 = vector.extract_strided_slice %53 {offsets = [0, 64], sizes = [2, 64], strides = [1, 1]} : vector<2x192xf32> to vector<2x64xf32>
    %64 = arith.addf %62, %63 : vector<2x64xf32>
    %65 = arith.negf %64 : vector<2x64xf32>
    %66 = math.exp %65 : vector<2x64xf32>
    %cst_24 = arith.constant 1.000000e+00 : f32
    %67 = vector.broadcast %cst_24 : f32 to vector<2x64xf32>
    %68 = arith.addf %67, %66 : vector<2x64xf32>
    %69 = arith.divf %67, %68 : vector<2x64xf32>
    %70 = vector.extract_strided_slice %52 {offsets = [0, 128], sizes = [2, 64], strides = [1, 1]} : vector<2x192xf32> to vector<2x64xf32>
    %71 = vector.extract_strided_slice %53 {offsets = [0, 128], sizes = [2, 64], strides = [1, 1]} : vector<2x192xf32> to vector<2x64xf32>
    %72 = arith.mulf %61, %71 : vector<2x64xf32>
    %73 = arith.addf %70, %72 : vector<2x64xf32>
    %74 = math.tanh %73 : vector<2x64xf32>
    %cst_25 = arith.constant 1.000000e+00 : f32
    %75 = vector.broadcast %cst_25 : f32 to vector<2x64xf32>
    %76 = arith.subf %75, %69 : vector<2x64xf32>
    %77 = arith.mulf %76, %74 : vector<2x64xf32>
    %78 = arith.mulf %69, %9 : vector<2x64xf32>
    %79 = arith.addf %77, %78 : vector<2x64xf32>
    %80 = arith.truncf %79 : vector<2x64xf32> to vector<2x64xbf16>
    %c0_26 = arith.constant 0 : index
    %c0_27 = arith.constant 0 : index
    %81 = vector.load %arg6[%c0_26, %c0_27] : memref<128x64xbf16, #tpu.memory_space<vmem>>, vector<64x64xbf16>
    %cst_28 = arith.constant dense<0.000000e+00> : vector<2x64xf32>
    %82 = tpu.matmul %80, %81, %cst_28 {dimension_numbers = #tpu.dot_dimension_numbers<[1], [0], [0], [1], [0, 0, 1, 1], [], []>} : vector<2x64xbf16>, vector<64x64xbf16>, vector<2x64xf32> -> vector<2x64xf32>
    %83 = vector.extract_strided_slice %11 {offsets = [0, 192], sizes = [2, 64], strides = [1, 1]} : vector<2x256xf32> to vector<2x64xf32>
    %84 = arith.addf %82, %83 : vector<2x64xf32>
    %cst_29 = arith.constant 0.000000e+00 : f32
    %85 = vector.broadcast %cst_29 : f32 to vector<2x64xf32>
    %86 = arith.maximumf %84, %85 : vector<2x64xf32>
    %87 = arith.truncf %86 : vector<2x64xf32> to vector<2x64xbf16>
    %c64 = arith.constant 64 : index
    %c0_30 = arith.constant 0 : index
    %88 = vector.load %arg6[%c64, %c0_30] : memref<128x64xbf16, #tpu.memory_space<vmem>>, vector<64x64xbf16>
    %cst_31 = arith.constant dense<0.000000e+00> : vector<2x64xf32>
    %89 = tpu.matmul %87, %88, %cst_31 {dimension_numbers = #tpu.dot_dimension_numbers<[1], [0], [0], [1], [0, 0, 1, 1], [], []>} : vector<2x64xbf16>, vector<64x64xbf16>, vector<2x64xf32> -> vector<2x64xf32>
    %c2 = arith.constant 2 : index
    %c0_32 = arith.constant 0 : index
    %90 = vector.load %arg7[%c2, %c0_32] : memref<3x384xf32, #tpu.memory_space<vmem>>, vector<1x64xf32>
    %91 = vector.broadcast %90 : vector<1x64xf32> to vector<2x64xf32>
    %92 = arith.addf %89, %91 : vector<2x64xf32>
    %c0_33 = arith.constant 0 : index
    %c0_34 = arith.constant 0 : index
    %c0_35 = arith.constant 0 : index
    %93 = vector.load %arg9[%c0_33, %c0_34, %c0_35] : memref<2x2x64xf32, #tpu.memory_space<vmem>>, vector<1x2x64xf32>
    %94 = vector.shape_cast %93 : vector<1x2x64xf32> to vector<2x64xf32>
    %95 = vector.shape_cast %46 : vector<2x64xf32> to vector<1x2x64xf32>
    tpu.vector_store %arg9[%c0_33, %c0_34, %c0_35], %95 {strides = array<i32>} : memref<2x2x64xf32, #tpu.memory_space<vmem>>, vector<1x2x64xf32>,
    %c1_36 = arith.constant 1 : index
    %c0_37 = arith.constant 0 : index
    %c0_38 = arith.constant 0 : index
    %96 = vector.load %arg9[%c1_36, %c0_37, %c0_38] : memref<2x2x64xf32, #tpu.memory_space<vmem>>, vector<1x2x64xf32>
    %97 = vector.shape_cast %96 : vector<1x2x64xf32> to vector<2x64xf32>
    %98 = vector.shape_cast %79 : vector<2x64xf32> to vector<1x2x64xf32>
    tpu.vector_store %arg9[%c1_36, %c0_37, %c0_38], %98 {strides = array<i32>} : memref<2x2x64xf32, #tpu.memory_space<vmem>>, vector<1x2x64xf32>,
    %99 = tpu.concatenate %46, %79, %92 in 1 : vector<2x64xf32>, vector<2x64xf32>, vector<2x64xf32> -> vector<2x192xf32>
    %c0_39 = arith.constant 0 : index
    %c0_40 = arith.constant 0 : index
    %c0_41 = arith.constant 0 : index
    %100 = vector.load %arg8[%c0_39, %c0_40, %c0_41] : memref<1x2x192xf32, #tpu.memory_space<vmem>>, vector<1x2x192xf32>
    %101 = vector.shape_cast %100 : vector<1x2x192xf32> to vector<2x192xf32>
    %102 = vector.shape_cast %99 : vector<2x192xf32> to vector<1x2x192xf32>
    tpu.vector_store %arg8[%c0_39, %c0_40, %c0_41], %102 {strides = array<i32>} : memref<1x2x192xf32, #tpu.memory_space<vmem>>, vector<1x2x192xf32>,
    return
  }
  func.func @transform_0(%arg0: i32) -> (i32, i32, i32) {
    %c0_i32 = arith.constant 0 : i32
    %c0_i32_0 = arith.constant 0 : i32
    %c0_i32_1 = arith.constant 0 : i32
    return %arg0, %c0_i32, %c0_i32_0 : i32, i32, i32
  }
  func.func @transform_1(%arg0: i32) -> (i32, i32, i32) {
    %c0_i32 = arith.constant 0 : i32
    %c0_i32_0 = arith.constant 0 : i32
    %c0_i32_1 = arith.constant 0 : i32
    %c0_i32_2 = arith.constant 0 : i32
    return %c0_i32, %c0_i32_0, %c0_i32_1 : i32, i32, i32
  }
  func.func @transform_2(%arg0: i32) -> (i32, i32) {
    %c0_i32 = arith.constant 0 : i32
    %c0_i32_0 = arith.constant 0 : i32
    %c0_i32_1 = arith.constant 0 : i32
    return %c0_i32, %c0_i32_0 : i32, i32
  }
  func.func @transform_3(%arg0: i32) -> (i32, i32) {
    %c0_i32 = arith.constant 0 : i32
    %c0_i32_0 = arith.constant 0 : i32
    %c0_i32_1 = arith.constant 0 : i32
    return %c0_i32, %c0_i32_0 : i32, i32
  }
  func.func @transform_4(%arg0: i32) -> (i32, i32) {
    %c0_i32 = arith.constant 0 : i32
    %c0_i32_0 = arith.constant 0 : i32
    %c0_i32_1 = arith.constant 0 : i32
    return %c0_i32, %c0_i32_0 : i32, i32
  }
  func.func @transform_5(%arg0: i32) -> (i32, i32) {
    %c0_i32 = arith.constant 0 : i32
    %c0_i32_0 = arith.constant 0 : i32
    %c0_i32_1 = arith.constant 0 : i32
    return %c0_i32, %c0_i32_0 : i32, i32
  }
  func.func @transform_6(%arg0: i32) -> (i32, i32) {
    %c0_i32 = arith.constant 0 : i32
    %c0_i32_0 = arith.constant 0 : i32
    %c0_i32_1 = arith.constant 0 : i32
    return %c0_i32, %c0_i32_0 : i32, i32
  }
  func.func @transform_7(%arg0: i32) -> (i32, i32, i32) {
    %c0_i32 = arith.constant 0 : i32
    %c0_i32_0 = arith.constant 0 : i32
    %c0_i32_1 = arith.constant 0 : i32
    return %arg0, %c0_i32, %c0_i32_0 : i32, i32, i32
  }
}

</mosaic_0001>

<llo_original>
// kernel: _step_impl.1
$region0: #{_step_impl.1}
  #allocation0 [shape = 'u32[]', space=smem, size = 0x4, offset = 0x4, fixed_abs, tag = 'smem constant byte address 0x4 - core index']
  #allocation1 [shape = 'u32[144,128]{1,0:T(1,128)}', space=vmem, size = 0x12000, scoped, tag = 'internal scratch']
  #allocation2 [shape = 'f32[2,2,64]{2,1,0:T(2,128)}', space=vmem, size = 0x800, scoped, tag = 'scratch operand']
  %s0 = inlined_call_operand.vmem [shape: f32[1,2,80], index: 0, kind: input, shape index: {}]
  %s1 = inlined_call_operand.vmem [shape: f32[2,2,64], index: 1, kind: input, shape index: {}]
  %s2 = inlined_call_operand.vmem [shape: bf16[80,256], index: 2, kind: input, shape index: {}]
  %s3 = inlined_call_operand.hbm [shape: bf16[128,384], index: 3, kind: input, shape index: {}]
  %s4 = inlined_call_operand.hbm [shape: bf16[64,192], index: 4, kind: input, shape index: {}]
  %s5 = inlined_call_operand.vmem [shape: bf16[128,64], index: 5, kind: input, shape index: {}]
  %s6 = inlined_call_operand.vmem [shape: f32[3,384], index: 6, kind: input, shape index: {}]
  %s7 = inlined_call_operand.vmem [shape: f32[1,2,192], index: 7, kind: output, shape index: {}]
  %s8 = sld [smem:[#allocation0]]
  $region50: #{_step_impl.1} parent=0
    _
  %s10 = ssub.s32 1, %s8
  %s11 = scalar_select 0, %s10, %s8
  $region1: #{_step_impl.1} parent=0
    #allocation3 [shape = 'u8[98304]{0}', space=vmem, size = 0x18000, scoped, tag = 'input window, operand 3, single buffered']
    #allocation4 [shape = 's32[1]{0}', space=sflag, size = 0x4, scoped, tag = 'scoped memory for _step_impl.1']
    #allocation5 [shape = 'u8[32768]{0}', space=vmem, size = 0x8000, scoped, tag = 'input window, operand 4, single buffered']
    #allocation6 [shape = 's32[1]{0}', space=sflag, size = 0x4, scoped, tag = 'scoped memory for _step_impl.1']
    %12 = vsyncpa [#allocation4], 0
    %13 = vsyncpa [#allocation6], 0
    // Predicated region
    $region2: #{_step_impl.1} parent=1 // pred_check
      _
    $region3: #{_step_impl.1} parent=1 // pred_check_branch
      %15 = sbr.rel (0) target = $region5
    $region4: #{_step_impl.1} parent=1 // pred_region
      _
    $region5: #{_step_impl.1} parent=1 // pred_fallthru
      _
    // Predicated region
    $region6: #{_step_impl.1} parent=1 // pred_check
      _
    $region7: #{_step_impl.1} parent=1 // pred_check_branch
      %17 = sbr.rel (0) target = $region9
    $region8: #{_step_impl.1} parent=1 // pred_region
      _
    $region9: #{_step_impl.1} parent=1 // pred_fallthru
      _
    // Predicated region
    $region10: #{_step_impl.1} parent=1 // pred_check
      _
    $region11: #{_step_impl.1} parent=1 // pred_check_branch
      %19 = sbr.rel (0) target = $region13
    $region12: #{_step_impl.1} parent=1 // pred_region
      _
    $region13: #{_step_impl.1} parent=1 // pred_fallthru
      _
    // Predicated region
    $region14: #{_step_impl.1} parent=1 // pred_check
      _
    $region15: #{_step_impl.1} parent=1 // pred_check_branch
      %21 = sbr.rel (0) target = $region17
    $region16: #{_step_impl.1} parent=1 // pred_region
      %s23 = ssub.s32 3072, 3072
      %24 = vsyncadd [#allocation4], %s23
      %s25 = sshll.u32 [#allocation3], 4
      %s26 = int_to_ptr.vmem [resolvable:$true] %s25
      %31 = dma.hbm_to_vmem [thread:$0]  %s3, 3072, %s26, [#allocation4], 192, 192, 12
    $region17: #{_step_impl.1} parent=1 // pred_fallthru
      _
    // Predicated region
    $region18: #{_step_impl.1} parent=1 // pred_check
      _
    $region19: #{_step_impl.1} parent=1 // pred_check_branch
      %33 = sbr.rel (0) target = $region21
    $region20: #{_step_impl.1} parent=1 // pred_region
      %s35 = ssub.s32 1024, 1024
      %36 = vsyncadd [#allocation6], %s35
      %s37 = sshll.u32 [#allocation5], 4
      %s38 = int_to_ptr.vmem [resolvable:$true] %s37
      %43 = dma.hbm_to_vmem [thread:$0]  %s4, 1024, %s38, [#allocation6], 128, 128, 8
    $region21: #{_step_impl.1} parent=1 // pred_fallthru
      _
    // Predicated region
    $region22: #{_step_impl.1} parent=1 // pred_check
      _
    $region23: #{_step_impl.1} parent=1 // pred_check_branch
      %45 = sbr.rel (0) target = $region25
    $region24: #{_step_impl.1} parent=1 // pred_region
      _
    $region25: #{_step_impl.1} parent=1 // pred_fallthru
      _
    // Predicated region
    $region26: #{_step_impl.1} parent=1 // pred_check
      _
    $region27: #{_step_impl.1} parent=1 // pred_check_branch
      %47 = sbr.rel (0) target = $region29
    $region28: #{_step_impl.1} parent=1 // pred_region
      _
    $region29: #{_step_impl.1} parent=1 // pred_fallthru
      _
    // Predicated region
    $region30: #{_step_impl.1} parent=1 // pred_check
      _
    $region31: #{_step_impl.1} parent=1 // pred_check_branch
      %49 = sbr.rel (0) target = $region33
    $region32: #{_step_impl.1} parent=1 // pred_region
      %50 = dma.done [#allocation4], 3072
    $region33: #{_step_impl.1} parent=1 // pred_fallthru
      _
    // Predicated region
    $region34: #{_step_impl.1} parent=1 // pred_check
      _
    $region35: #{_step_impl.1} parent=1 // pred_check_branch
      %52 = sbr.rel (0) target = $region37
    $region36: #{_step_impl.1} parent=1 // pred_region
      %53 = dma.done [#allocation6], 1024
    $region37: #{_step_impl.1} parent=1 // pred_fallthru
      _
    %p55 = scmp.eq.s32.totalorder 0, 0
    // Predicated region
    $region38: #{_step_impl.1} parent=1 // pred_check
      %p56 = pneg %p55
    $region39: #{_step_impl.1} parent=1 // pred_check_branch
      %58 = sbr.rel (%p56) target = $region41
    $region40: #{_step_impl.1} parent=1 // pred_region
      %v59 = vld [vmem:[%s1] sm:$0x3]
      %v60 = vld [vmem:[%s1 + $0x2] sm:$0x3]
      %vm61 = vcmask 517120
      %62 = vst.msk [vmem:[#allocation2] sm:$0x3] %vm61, %v59
      %63 = vst.msk [vmem:[#allocation2 + $0x2] sm:$0x3] %vm61, %v60
    $region41: #{_step_impl.1} parent=1 // pred_fallthru
      _
    %v64 = vld [vmem:[%s0] sm:$0x3]
    %v65 = vpack.c.bf16 %v64, %v64
    %v66 = vld [vmem:[#allocation2] sm:$0x3]
    %s67 = scalar_lea.vmem [#allocation2], 2
    %v68 = vld [vmem:[%s67] sm:$0x3]
    %v69 = vld [vmem:[%s2] sm:$0xff]
    %v70 = vld [vmem:[%s2 + $0x8] sm:$0xff]
    %v71 = vld [vmem:[%s2 + $0x10] sm:$0xff]
    %v72 = vld [vmem:[%s2 + $0x18] sm:$0xff]
    %v73 = vld [vmem:[%s2 + $0x20] sm:$0xff]
    %v74 = vld [vmem:[%s2 + $0x28] sm:$0xff]
    %v75 = vld [vmem:[%s2 + $0x30] sm:$0xff]
    %v76 = vld [vmem:[%s2 + $0x38] sm:$0xff]
    %v77 = vld [vmem:[%s2 + $0x40] sm:$0xff]
    %v78 = vld [vmem:[%s2 + $0x48] sm:$0xff]
    %v89 = vunpack.c.l.b16 %v69
    %v90 = vunpack.c.h.b16 %v69
    %v91 = vunpack.c.l.b16 %v70
    %v92 = vunpack.c.h.b16 %v70
    %v93 = vunpack.c.l.b16 %v71
    %v94 = vunpack.c.h.b16 %v71
    %v95 = vunpack.c.l.b16 %v72
    %v96 = vunpack.c.h.b16 %v72
    %v97 = vunpack.c.l.b16 %v73
    %v98 = vunpack.c.h.b16 %v73
    %v99 = vunpack.c.l.b16 %v74
    %v100 = vunpack.c.h.b16 %v74
    %v101 = vunpack.c.l.b16 %v75
    %v102 = vunpack.c.h.b16 %v75
    %v103 = vunpack.c.l.b16 %v76
    %v104 = vunpack.c.h.b16 %v76
    %v105 = vunpack.c.l.b16 %v77
    %v106 = vunpack.c.h.b16 %v77
    %v107 = vunpack.c.l.b16 %v78
    %v108 = vunpack.c.h.b16 %v78
    %v109 = vpack.c.b16 %v91, %v89
    %v110 = vpack.c.b16 %v92, %v90
    %v111 = vpack.c.b16 %v95, %v93
    %v112 = vpack.c.b16 %v96, %v94
    %v113 = vpack.c.b16 %v99, %v97
    %v114 = vpack.c.b16 %v100, %v98
    %v115 = vpack.c.b16 %v103, %v101
    %v116 = vpack.c.b16 %v104, %v102
    %v117 = vpack.c.b16 %v107, %v105
    %v118 = vpack.c.b16 %v108, %v106
    %vm129 = vcmask 654336
    %v131 = vsel %vm129, %v65, 0
    %133 = vmatprep.subr.bf16.mxu0 0
    %134 = vmatpush1.bf16.msra.mxu0 0
    %135 = vmatprep.subr.bf16.mxu0 0
    %136 = vmatpush1.bf16.msra.mxu0 0
    %137 = vmatprep.subr.bf16.mxu0 0
    %138 = vmatpush1.bf16.msra.mxu0 0
    %139 = vmatprep.subr.bf16.mxu0 %v118
    %140 = vmatpush1.bf16.msra.mxu0 %v117
    %141 = vmatprep.subr.bf16.mxu0 %v116
    %142 = vmatpush1.bf16.msra.mxu0 %v115
    %143 = vmatprep.subr.bf16.mxu0 %v114
    %144 = vmatpush1.bf16.msra.mxu0 %v113
    %145 = vmatprep.subr.bf16.mxu0 %v112
    %146 = vmatpush1.bf16.msra.mxu0 %v111
    %147 = vmatprep.subr.bf16.mxu0 %v110
    %148 = vmatpush1.bf16.msra.mxu0 %v109
    %149 = vmatprep.subr.bf16.mxu0 0
    %150 = vmatpush2.bf16.msra.mxu0 0
    %151 = vmatprep.subr.bf16.mxu0 0
    %152 = vmatpush2.bf16.msra.mxu0 0
    %153 = vmatprep.subr.bf16.mxu0 0
    %154 = vmatpush2.bf16.msra.mxu0 0
    %155 = vmatprep.subr.bf16.mxu0 0
    %156 = vmatpush2.bf16.msra.mxu0 0
    %157 = vmatprep.subr.bf16.mxu0 0
    %158 = vmatpush2.bf16.msra.mxu0 0
    %159 = vmatprep.subr.bf16.mxu0 0
    %160 = vmatpush2.bf16.msra.mxu0 0
    %161 = vmatprep.subr.bf16.mxu0 0
    %162 = vmatpush2.bf16.msra.mxu0 0
    %163 = vmatprep.subr.bf16.mxu0 0
    %164 = vmatpush2.bf16.msra.mxu0 0
    %165 = vmatprep.mubr.bf16.mxu0 0
    %166 = vmatmul.mubr.bf16.gmra.mxu0 %v131
    %v167 = vpop.f32.mrf.mxu0
    %v168 = vadd.f32 0.0, %v167
    %v169 = vpop.f32.mrf.mxu0
    %v170 = vadd.f32 0.0, %v169
    %v171 = vpop.f32.mrf.mxu0
    %v172 = vpop.f32.mrf.mxu0
    %173 = vdwg.mxu0
    %175 = vrot.lane.b32.xlu0 %v68, 64
    %v176 = vpop.permute.xlu0 %175
    %vm178 = vcmask 523264
    %v179 = vsel %vm178, %v66, %v176
    %v180 = vpack.c.bf16 %v179, %v179
    %v181 = vld [vmem:[#allocation3] sm:$0xff]
    %v182 = vld [vmem:[#allocation3 + $0x8] sm:$0xf]
    %v183 = vld [vmem:[#allocation3 + $0xc] sm:$0xff]
    %v184 = vld [vmem:[#allocation3 + $0x14] sm:$0xf]
    %v185 = vld [vmem:[#allocation3 + $0x18] sm:$0xff]
    %v186 = vld [vmem:[#allocation3 + $0x20] sm:$0xf]
    %v187 = vld [vmem:[#allocation3 + $0x24] sm:$0xff]
    %v188 = vld [vmem:[#allocation3 + $0x2c] sm:$0xf]
    %v189 = vld [vmem:[#allocation3 + $0x30] sm:$0xff]
    %v190 = vld [vmem:[#allocation3 + $0x38] sm:$0xf]
    %v191 = vld [vmem:[#allocation3 + $0x3c] sm:$0xff]
    %v192 = vld [vmem:[#allocation3 + $0x44] sm:$0xf]
    %v193 = vld [vmem:[#allocation3 + $0x48] sm:$0xff]
    %v194 = vld [vmem:[#allocation3 + $0x50] sm:$0xf]
    %v195 = vld [vmem:[#allocation3 + $0x54] sm:$0xff]
    %v196 = vld [vmem:[#allocation3 + $0x5c] sm:$0xf]
    %v197 = vld [vmem:[#allocation3 + $0x60] sm:$0xff]
    %v198 = vld [vmem:[#allocation3 + $0x68] sm:$0xf]
    %v199 = vld [vmem:[#allocation3 + $0x6c] sm:$0xff]
    %v200 = vld [vmem:[#allocation3 + $0x74] sm:$0xf]
    %v201 = vld [vmem:[#allocation3 + $0x78] sm:$0xff]
    %v202 = vld [vmem:[#allocation3 + $0x80] sm:$0xf]
    %v203 = vld [vmem:[#allocation3 + $0x84] sm:$0xff]
    %v204 = vld [vmem:[#allocation3 + $0x8c] sm:$0xf]
    %v205 = vld [vmem:[#allocation3 + $0x90] sm:$0xff]
    %v206 = vld [vmem:[#allocation3 + $0x98] sm:$0xf]
    %v207 = vld [vmem:[#allocation3 + $0x9c] sm:$0xff]
    %v208 = vld [vmem:[#allocation3 + $0xa4] sm:$0xf]
    %v209 = vld [vmem:[#allocation3 + $0xa8] sm:$0xff]
    %v210 = vld [vmem:[#allocation3 + $0xb0] sm:$0xf]
    %v211 = vld [vmem:[#allocation3 + $0xb4] sm:$0xff]
    %v212 = vld [vmem:[#allocation3 + $0xbc] sm:$0xf]
    %v213 = vld [vmem:[%s6] ss:$4 sm:$0x7]
    %v215 = vlaneseq
    %v216 = vshrl.u32 %v215, 7
    %v217 = vsub.s32 0, %v216
    %v218 = vrot.slane %v213, %v217
    %v219 = vlaneseq
    %v220 = vshrl.u32 %v219, 7
    %v221 = vsub.s32 1, %v220
    %v222 = vrot.slane %v213, %v221
    %v223 = vlaneseq
    %v224 = vshrl.u32 %v223, 7
    %v225 = vsub.s32 2, %v224
    %v226 = vrot.slane %v213, %v225
    %v262 = vunpack.c.l.b16 %v181
    %v263 = vunpack.c.h.b16 %v181
    %v264 = vunpack.c.l.b16 %v182
    %v265 = vunpack.c.l.b16 %v183
    %v266 = vunpack.c.h.b16 %v183
    %v267 = vunpack.c.l.b16 %v184
    %v268 = vunpack.c.l.b16 %v185
    %v269 = vunpack.c.h.b16 %v185
    %v270 = vunpack.c.l.b16 %v186
    %v271 = vunpack.c.l.b16 %v187
    %v272 = vunpack.c.h.b16 %v187
    %v273 = vunpack.c.l.b16 %v188
    %v274 = vunpack.c.l.b16 %v189
    %v275 = vunpack.c.h.b16 %v189
    %v276 = vunpack.c.l.b16 %v190
    %v277 = vunpack.c.l.b16 %v191
    %v278 = vunpack.c.h.b16 %v191
    %v279 = vunpack.c.l.b16 %v192
    %v280 = vunpack.c.l.b16 %v193
    %v281 = vunpack.c.h.b16 %v193
    %v282 = vunpack.c.l.b16 %v194
    %v283 = vunpack.c.l.b16 %v195
    %v284 = vunpack.c.h.b16 %v195
    %v285 = vunpack.c.l.b16 %v196
    %v286 = vunpack.c.l.b16 %v197
    %v287 = vunpack.c.h.b16 %v197
    %v288 = vunpack.c.l.b16 %v198
    %v289 = vunpack.c.l.b16 %v199
    %v290 = vunpack.c.h.b16 %v199
    %v291 = vunpack.c.l.b16 %v200
    %v292 = vunpack.c.l.b16 %v201
    %v293 = vunpack.c.h.b16 %v201
    %v294 = vunpack.c.l.b16 %v202
    %v295 = vunpack.c.l.b16 %v203
    %v296 = vunpack.c.h.b16 %v203
    %v297 = vunpack.c.l.b16 %v204
    %v298 = vunpack.c.l.b16 %v205
    %v299 = vunpack.c.h.b16 %v205
    %v300 = vunpack.c.l.b16 %v206
    %v301 = vunpack.c.l.b16 %v207
    %v302 = vunpack.c.h.b16 %v207
    %v303 = vunpack.c.l.b16 %v208
    %v304 = vunpack.c.l.b16 %v209
    %v305 = vunpack.c.h.b16 %v209
    %v306 = vunpack.c.l.b16 %v210
    %v307 = vunpack.c.l.b16 %v211
    %v308 = vunpack.c.h.b16 %v211
    %v309 = vunpack.c.l.b16 %v212
    %v310 = vpack.c.b16 %v265, %v262
    %v311 = vpack.c.b16 %v266, %v263
    %v312 = vpack.c.b16 %v267, %v264
    %v313 = vpack.c.b16 %v271, %v268
    %v314 = vpack.c.b16 %v272, %v269
    %v315 = vpack.c.b16 %v273, %v270
    %v316 = vpack.c.b16 %v277, %v274
    %v317 = vpack.c.b16 %v278, %v275
    %v318 = vpack.c.b16 %v279, %v276
    %v319 = vpack.c.b16 %v283, %v280
    %v320 = vpack.c.b16 %v284, %v281
    %v321 = vpack.c.b16 %v285, %v282
    %v322 = vpack.c.b16 %v289, %v286
    %v323 = vpack.c.b16 %v290, %v287
    %v324 = vpack.c.b16 %v291, %v288
    %v325 = vpack.c.b16 %v295, %v292
    %v326 = vpack.c.b16 %v296, %v293
    %v327 = vpack.c.b16 %v297, %v294
    %v328 = vpack.c.b16 %v301, %v298
    %v329 = vpack.c.b16 %v302, %v299
    %v330 = vpack.c.b16 %v303, %v300
    %v331 = vpack.c.b16 %v307, %v304
    %v332 = vpack.c.b16 %v308, %v305
    %v333 = vpack.c.b16 %v309, %v306
    %358 = vmatprep.subr.bf16.mxu0 %v332
    %359 = vmatpush1.bf16.msra.mxu0 %v331
    %360 = vmatprep.subr.bf16.mxu0 %v329
    %361 = vmatpush1.bf16.msra.mxu0 %v328
    %362 = vmatprep.subr.bf16.mxu0 %v326
    %363 = vmatpush1.bf16.msra.mxu0 %v325
    %364 = vmatprep.subr.bf16.mxu0 %v323
    %365 = vmatpush1.bf16.msra.mxu0 %v322
    %366 = vmatprep.subr.bf16.mxu0 %v320
    %367 = vmatpush1.bf16.msra.mxu0 %v319
    %368 = vmatprep.subr.bf16.mxu0 %v317
    %369 = vmatpush1.bf16.msra.mxu0 %v316
    %370 = vmatprep.subr.bf16.mxu0 %v314
    %371 = vmatpush1.bf16.msra.mxu0 %v313
    %372 = vmatprep.subr.bf16.mxu0 %v311
    %373 = vmatpush1.bf16.msra.mxu0 %v310
    %374 = vmatprep.subr.bf16.mxu0 0
    %375 = vmatpush2.bf16.msra.mxu0 0
    %376 = vmatprep.subr.bf16.mxu0 0
    %377 = vmatpush2.bf16.msra.mxu0 0
    %378 = vmatprep.subr.bf16.mxu0 0
    %379 = vmatpush2.bf16.msra.mxu0 0
    %380 = vmatprep.subr.bf16.mxu0 0
    %381 = vmatpush2.bf16.msra.mxu0 0
    %382 = vmatprep.subr.bf16.mxu0 0
    %383 = vmatpush2.bf16.msra.mxu0 0
    %384 = vmatprep.subr.bf16.mxu0 0
    %385 = vmatpush2.bf16.msra.mxu0 0
    %386 = vmatprep.subr.bf16.mxu0 0
    %387 = vmatpush2.bf16.msra.mxu0 0
    %388 = vmatprep.subr.bf16.mxu0 0
    %389 = vmatpush2.bf16.msra.mxu0 0
    %390 = vmatprep.mubr.bf16.mxu0 0
    %391 = vmatmul.mubr.bf16.gmra.mxu0 %v180
    %v392 = vpop.f32.mrf.mxu0
    %v393 = vadd.f32 %v218, %v392
    %v394 = vpop.f32.mrf.mxu0
    %v395 = vadd.f32 %v222, %v394
    %v396 = vpop.f32.mrf.mxu0
    %v397 = vpop.f32.mrf.mxu0
    %398 = vdwg.mxu0
    %399 = vmatprep.subr.bf16.mxu0 0
    %400 = vmatpush1.bf16.msra.mxu0 %v333
    %401 = vmatprep.subr.bf16.mxu0 0
    %402 = vmatpush1.bf16.msra.mxu0 %v330
    %403 = vmatprep.subr.bf16.mxu0 0
    %404 = vmatpush1.bf16.msra.mxu0 %v327
    %405 = vmatprep.subr.bf16.mxu0 0
    %406 = vmatpush1.bf16.msra.mxu0 %v324
    %407 = vmatprep.subr.bf16.mxu0 0
    %408 = vmatpush1.bf16.msra.mxu0 %v321
    %409 = vmatprep.subr.bf16.mxu0 0
    %410 = vmatpush1.bf16.msra.mxu0 %v318
    %411 = vmatprep.subr.bf16.mxu0 0
    %412 = vmatpush1.bf16.msra.mxu0 %v315
    %413 = vmatprep.subr.bf16.mxu0 0
    %414 = vmatpush1.bf16.msra.mxu0 %v312
    %415 = vmatprep.subr.bf16.mxu0 0
    %416 = vmatpush2.bf16.msra.mxu0 0
    %417 = vmatprep.subr.bf16.mxu0 0
    %418 = vmatpush2.bf16.msra.mxu0 0
    %419 = vmatprep.subr.bf16.mxu0 0
    %420 = vmatpush2.bf16.msra.mxu0 0
    %421 = vmatprep.subr.bf16.mxu0 0
    %422 = vmatpush2.bf16.msra.mxu0 0
    %423 = vmatprep.subr.bf16.mxu0 0
    %424 = vmatpush2.bf16.msra.mxu0 0
    %425 = vmatprep.subr.bf16.mxu0 0
    %426 = vmatpush2.bf16.msra.mxu0 0
    %427 = vmatprep.subr.bf16.mxu0 0
    %428 = vmatpush2.bf16.msra.mxu0 0
    %429 = vmatprep.subr.bf16.mxu0 0
    %430 = vmatpush2.bf16.msra.mxu0 0
    %431 = vmatprep.mubr.bf16.mxu0 0
    %432 = vmatmul.mubr.bf16.gmra.mxu0 %v180
    %v433 = vpop.f32.mrf.mxu0
    %v434 = vadd.f32 %v226, %v433
    %v435 = vpop.f32.mrf.mxu0
    %v436 = vpop.f32.mrf.mxu0
    %v437 = vpop.f32.mrf.mxu0
    %438 = vdwg.mxu0
    %v439 = vadd.f32 %v168, %v393
    %v440 = vxor.u32 %v439, 2147483648
    %v441 = vmul.f32 %v440, 1.442695
    %v442 = vpow.pop %v441
    %v443 = vadd.f32 %v442, 1.0
    %v444 = vrcp.pop %v443
    %v445 = vmul.f32 1.0, %v444
    %v446 = vmul.f32 %v445, %v395
    %v447 = vadd.f32 %v170, %v446
    %v448 = vtanh.pop %v447
    %v449 = vsub.f32 1.0, %v445
    %451 = vrot.lane.b32.xlu0 %v448, 64
    %v452 = vpop.permute.xlu0 %451
    %v454 = vmul.f32 %v449, %v452
    %456 = vrot.lane.b32.xlu0 %v66, 64
    %v457 = vpop.permute.xlu0 %456
    %v459 = vmul.f32 %v445, %v457
    %v460 = vadd.f32 %v454, %v459
    %v461 = vpack.c.bf16 %v460, %v460
    %v462 = vld [vmem:[#allocation5] sm:$0xff]
    %v463 = vld [vmem:[#allocation5 + $0x8] sm:$0xff]
    %v464 = vld [vmem:[#allocation5 + $0x10] sm:$0xff]
    %v465 = vld [vmem:[#allocation5 + $0x18] sm:$0xff]
    %v466 = vld [vmem:[#allocation5 + $0x20] sm:$0xff]
    %v467 = vld [vmem:[#allocation5 + $0x28] sm:$0xff]
    %v468 = vld [vmem:[#allocation5 + $0x30] sm:$0xff]
    %v469 = vld [vmem:[#allocation5 + $0x38] sm:$0xff]
    %s470 = scalar_lea.vmem %s6, 1
    %v471 = vld [vmem:[%s470] ss:$4 sm:$0x3]
    %v473 = vlaneseq
    %v474 = vshrl.u32 %v473, 7
    %v475 = vsub.s32 0, %v474
    %v476 = vrot.slane %v471, %v475
    %v477 = vlaneseq
    %v478 = vshrl.u32 %v477, 7
    %v479 = vsub.s32 1, %v478
    %v480 = vrot.slane %v471, %v479
    %484 = vrot.lane.b32.xlu0 %v461, 64
    %v485 = vpop.permute.xlu0 %484
    %v494 = vunpack.c.l.b16 %v462
    %v495 = vunpack.c.h.b16 %v462
    %v496 = vunpack.c.l.b16 %v463
    %v497 = vunpack.c.h.b16 %v463
    %v498 = vunpack.c.l.b16 %v464
    %v499 = vunpack.c.h.b16 %v464
    %v500 = vunpack.c.l.b16 %v465
    %v501 = vunpack.c.h.b16 %v465
    %v502 = vunpack.c.l.b16 %v466
    %v503 = vunpack.c.h.b16 %v466
    %v504 = vunpack.c.l.b16 %v467
    %v505 = vunpack.c.h.b16 %v467
    %v506 = vunpack.c.l.b16 %v468
    %v507 = vunpack.c.h.b16 %v468
    %v508 = vunpack.c.l.b16 %v469
    %v509 = vunpack.c.h.b16 %v469
    %v510 = vpack.c.b16 %v496, %v494
    %v511 = vpack.c.b16 %v497, %v495
    %v512 = vpack.c.b16 %v500, %v498
    %v513 = vpack.c.b16 %v501, %v499
    %v514 = vpack.c.b16 %v504, %v502
    %v515 = vpack.c.b16 %v505, %v503
    %v516 = vpack.c.b16 %v508, %v506
    %v517 = vpack.c.b16 %v509, %v507
    %v527 = vsel %vm178, %v485, 0
    %529 = vmatprep.subr.bf16.mxu0 0
    %530 = vmatpush1.bf16.msra.mxu0 0
    %531 = vmatprep.subr.bf16.mxu0 0
    %532 = vmatpush1.bf16.msra.mxu0 0
    %533 = vmatprep.subr.bf16.mxu0 0
    %534 = vmatpush1.bf16.msra.mxu0 0
    %535 = vmatprep.subr.bf16.mxu0 0
    %536 = vmatpush1.bf16.msra.mxu0 0
    %537 = vmatprep.subr.bf16.mxu0 %v517
    %538 = vmatpush1.bf16.msra.mxu0 %v516
    %539 = vmatprep.subr.bf16.mxu0 %v515
    %540 = vmatpush1.bf16.msra.mxu0 %v514
    %541 = vmatprep.subr.bf16.mxu0 %v513
    %542 = vmatpush1.bf16.msra.mxu0 %v512
    %543 = vmatprep.subr.bf16.mxu0 %v511
    %544 = vmatpush1.bf16.msra.mxu0 %v510
    %545 = vmatprep.subr.bf16.mxu0 0
    %546 = vmatpush2.bf16.msra.mxu0 0
    %547 = vmatprep.subr.bf16.mxu0 0
    %548 = vmatpush2.bf16.msra.mxu0 0
    %549 = vmatprep.subr.bf16.mxu0 0
    %550 = vmatpush2.bf16.msra.mxu0 0
    %551 = vmatprep.subr.bf16.mxu0 0
    %552 = vmatpush2.bf16.msra.mxu0 0
    %553 = vmatprep.subr.bf16.mxu0 0
    %554 = vmatpush2.bf16.msra.mxu0 0
    %555 = vmatprep.subr.bf16.mxu0 0
    %556 = vmatpush2.bf16.msra.mxu0 0
    %557 = vmatprep.subr.bf16.mxu0 0
    %558 = vmatpush2.bf16.msra.mxu0 0
    %559 = vmatprep.subr.bf16.mxu0 0
    %560 = vmatpush2.bf16.msra.mxu0 0
    %561 = vmatprep.mubr.bf16.mxu0 0
    %562 = vmatmul.mubr.bf16.gmra.mxu0 %v527
    %v563 = vpop.f32.mrf.mxu0
    %v564 = vadd.f32 %v476, %v563
    %v565 = vpop.f32.mrf.mxu0
    %v566 = vadd.f32 %v480, %v565
    %v567 = vpop.f32.mrf.mxu0
    %v568 = vpop.f32.mrf.mxu0
    %569 = vdwg.mxu0
    %571 = vrot.lane.b32.xlu0 %v395, 64
    %v572 = vpop.permute.xlu0 %571
    %v574 = vadd.f32 %v564, %v572
    %v575 = vxor.u32 %v574, 2147483648
    %v576 = vmul.f32 %v575, 1.442695
    %v577 = vpow.pop %v576
    %v578 = vadd.f32 %v577, 1.0
    %v579 = vrcp.pop %v578
    %v580 = vmul.f32 1.0, %v579
    %582 = vrot.lane.b32.xlu0 %v434, 64
    %v583 = vpop.permute.xlu0 %582
    %v585 = vadd.f32 %v564, %v583
    %v586 = vxor.u32 %v585, 2147483648
    %v587 = vmul.f32 %v586, 1.442695
    %v588 = vpow.pop %v587
    %v589 = vadd.f32 %v588, 1.0
    %v590 = vrcp.pop %v589
    %v591 = vmul.f32 1.0, %v590
    %v592 = vmul.f32 %v580, %v583
    %v593 = vadd.f32 %v566, %v592
    %v594 = vtanh.pop %v593
    %v595 = vsub.f32 1.0, %v591
    %597 = vrot.lane.b32.xlu0 %v594, 64
    %v598 = vpop.permute.xlu0 %597
    %v600 = vmul.f32 %v595, %v598
    %v601 = vmul.f32 %v591, %v176
    %v602 = vadd.f32 %v600, %v601
    %v603 = vpack.c.bf16 %v602, %v602
    %v604 = vld [vmem:[%s5] sm:$0xf]
    %v605 = vld [vmem:[%s5 + $0x4] sm:$0xf]
    %v606 = vld [vmem:[%s5 + $0x8] sm:$0xf]
    %v607 = vld [vmem:[%s5 + $0xc] sm:$0xf]
    %v608 = vld [vmem:[%s5 + $0x10] sm:$0xf]
    %v609 = vld [vmem:[%s5 + $0x14] sm:$0xf]
    %v610 = vld [vmem:[%s5 + $0x18] sm:$0xf]
    %v611 = vld [vmem:[%s5 + $0x1c] sm:$0xf]
    %613 = vrot.lane.b32.xlu0 %v603, 64
    %v614 = vpop.permute.xlu0 %613
    %v623 = vunpack.c.l.b16 %v604
    %v624 = vunpack.c.l.b16 %v605
    %v625 = vunpack.c.l.b16 %v606
    %v626 = vunpack.c.l.b16 %v607
    %v627 = vunpack.c.l.b16 %v608
    %v628 = vunpack.c.l.b16 %v609
    %v629 = vunpack.c.l.b16 %v610
    %v630 = vunpack.c.l.b16 %v611
    %v631 = vpack.c.b16 %v624, %v623
    %v632 = vpack.c.b16 %v626, %v625
    %v633 = vpack.c.b16 %v628, %v627
    %v634 = vpack.c.b16 %v630, %v629
    %640 = vrot.lane.b32.xlu0 %v170, 64
    %v641 = vpop.permute.xlu0 %640
    %v644 = vsel %vm178, %v614, 0
    %646 = vmatprep.subr.bf16.mxu0 0
    %647 = vmatpush1.bf16.msra.mxu0 0
    %648 = vmatprep.subr.bf16.mxu0 0
    %649 = vmatpush1.bf16.msra.mxu0 0
    %650 = vmatprep.subr.bf16.mxu0 0
    %651 = vmatpush1.bf16.msra.mxu0 0
    %652 = vmatprep.subr.bf16.mxu0 0
    %653 = vmatpush1.bf16.msra.mxu0 0
    %654 = vmatprep.subr.bf16.mxu0 0
    %655 = vmatpush1.bf16.msra.mxu0 %v634
    %656 = vmatprep.subr.bf16.mxu0 0
    %657 = vmatpush1.bf16.msra.mxu0 %v633
    %658 = vmatprep.subr.bf16.mxu0 0
    %659 = vmatpush1.bf16.msra.mxu0 %v632
    %660 = vmatprep.subr.bf16.mxu0 0
    %661 = vmatpush1.bf16.msra.mxu0 %v631
    %662 = vmatprep.subr.bf16.mxu0 0
    %663 = vmatpush2.bf16.msra.mxu0 0
    %664 = vmatprep.subr.bf16.mxu0 0
    %665 = vmatpush2.bf16.msra.mxu0 0
    %666 = vmatprep.subr.bf16.mxu0 0
    %667 = vmatpush2.bf16.msra.mxu0 0
    %668 = vmatprep.subr.bf16.mxu0 0
    %669 = vmatpush2.bf16.msra.mxu0 0
    %670 = vmatprep.subr.bf16.mxu0 0
    %671 = vmatpush2.bf16.msra.mxu0 0
    %672 = vmatprep.subr.bf16.mxu0 0
    %673 = vmatpush2.bf16.msra.mxu0 0
    %674 = vmatprep.subr.bf16.mxu0 0
    %675 = vmatpush2.bf16.msra.mxu0 0
    %676 = vmatprep.subr.bf16.mxu0 0
    %677 = vmatpush2.bf16.msra.mxu0 0
    %678 = vmatprep.mubr.bf16.mxu0 0
    %679 = vmatmul.mubr.bf16.gmra.mxu0 %v644
    %v680 = vpop.f32.mrf.mxu0
    %v681 = vadd.f32 %v641, %v680
    %v682 = vpop.f32.mrf.mxu0
    %v683 = vpop.f32.mrf.mxu0
    %v684 = vpop.f32.mrf.mxu0
    %685 = vdwg.mxu0
    %v686 = vmax.f32 %v681, 0.0
    %v687 = vpack.c.bf16 %v686, %v686
    %v688 = vld [vmem:[%s5 + $0x20] sm:$0xf]
    %v689 = vld [vmem:[%s5 + $0x24] sm:$0xf]
    %v690 = vld [vmem:[%s5 + $0x28] sm:$0xf]
    %v691 = vld [vmem:[%s5 + $0x2c] sm:$0xf]
    %v692 = vld [vmem:[%s5 + $0x30] sm:$0xf]
    %v693 = vld [vmem:[%s5 + $0x34] sm:$0xf]
    %v694 = vld [vmem:[%s5 + $0x38] sm:$0xf]
    %v695 = vld [vmem:[%s5 + $0x3c] sm:$0xf]
    %v696 = vld [vmem:[%s6 + $0x2] sm:$0x1]
    %v697 = vlaneseq
    %v698 = vshrl.u32 %v697, 7
    %v699 = vsub.s32 0, %v698
    %v700 = vrot.slane %v696, %v699
    %v709 = vunpack.c.l.b16 %v688
    %v710 = vunpack.c.l.b16 %v689
    %v711 = vunpack.c.l.b16 %v690
    %v712 = vunpack.c.l.b16 %v691
    %v713 = vunpack.c.l.b16 %v692
    %v714 = vunpack.c.l.b16 %v693
    %v715 = vunpack.c.l.b16 %v694
    %v716 = vunpack.c.l.b16 %v695
    %v717 = vpack.c.b16 %v710, %v709
    %v718 = vpack.c.b16 %v712, %v711
    %v719 = vpack.c.b16 %v714, %v713
    %v720 = vpack.c.b16 %v716, %v715
    %v726 = vsel %vm178, %v687, 0
    %728 = vmatprep.subr.bf16.mxu0 0
    %729 = vmatpush1.bf16.msra.mxu0 0
    %730 = vmatprep.subr.bf16.mxu0 0
    %731 = vmatpush1.bf16.msra.mxu0 0
    %732 = vmatprep.subr.bf16.mxu0 0
    %733 = vmatpush1.bf16.msra.mxu0 0
    %734 = vmatprep.subr.bf16.mxu0 0
    %735 = vmatpush1.bf16.msra.mxu0 0
    %736 = vmatprep.subr.bf16.mxu0 0
    %737 = vmatpush1.bf16.msra.mxu0 %v720
    %738 = vmatprep.subr.bf16.mxu0 0
    %739 = vmatpush1.bf16.msra.mxu0 %v719
    %740 = vmatprep.subr.bf16.mxu0 0
    %741 = vmatpush1.bf16.msra.mxu0 %v718
    %742 = vmatprep.subr.bf16.mxu0 0
    %743 = vmatpush1.bf16.msra.mxu0 %v717
    %744 = vmatprep.subr.bf16.mxu0 0
    %745 = vmatpush2.bf16.msra.mxu0 0
    %746 = vmatprep.subr.bf16.mxu0 0
    %747 = vmatpush2.bf16.msra.mxu0 0
    %748 = vmatprep.subr.bf16.mxu0 0
    %749 = vmatpush2.bf16.msra.mxu0 0
    %750 = vmatprep.subr.bf16.mxu0 0
    %751 = vmatpush2.bf16.msra.mxu0 0
    %752 = vmatprep.subr.bf16.mxu0 0
    %753 = vmatpush2.bf16.msra.mxu0 0
    %754 = vmatprep.subr.bf16.mxu0 0
    %755 = vmatpush2.bf16.msra.mxu0 0
    %756 = vmatprep.subr.bf16.mxu0 0
    %757 = vmatpush2.bf16.msra.mxu0 0
    %758 = vmatprep.subr.bf16.mxu0 0
    %759 = vmatpush2.bf16.msra.mxu0 0
    %760 = vmatprep.mubr.bf16.mxu0 0
    %761 = vmatmul.mubr.bf16.gmra.mxu0 %v726
    %v762 = vpop.f32.mrf.mxu0
    %v763 = vadd.f32 %v700, %v762
    %v764 = vpop.f32.mrf.mxu0
    %v765 = vpop.f32.mrf.mxu0
    %v766 = vpop.f32.mrf.mxu0
    %767 = vdwg.mxu0
    %769 = vrot.lane.b32.xlu0 %v460, 64
    %v770 = vpop.permute.xlu0 %769
    %vm772 = vcmask 517120
    %773 = vst.msk [vmem:[#allocation2] sm:$0x3] %vm772, %v770
    %775 = vrot.lane.b32.xlu0 %v602, 64
    %v776 = vpop.permute.xlu0 %775
    %778 = vst.msk [vmem:[%s67] sm:$0x3] %vm772, %v776
    %v779 = vsel %vm178, %v770, %v602
    %v782 = vcombine.low %v779, %v763
    %v784 = vunpack.c.l.s4 1983009808
    %v785 = vunpack.c.0.s8 %v784
    %v786 = vlaneseq
    %v787 = vshrl.u32 %v786, 7
    %v788 = vsub.s32 %v785, %v787
    %v789 = vrot.slane %v782, %v788
    %vm791 = vcmask 1041408
    %vm792 = vcmask 519170
    %vm793 = vmor %vm792, %vm791
    %794 = vst.msk [vmem:[%s7] sm:$0xf] %vm793, %v789
    // Predicated region
    $region42: #{_step_impl.1} parent=1 // pred_check
      _
    $region43: #{_step_impl.1} parent=1 // pred_check_branch
      %796 = sbr.rel (0) target = $region45
    $region44: #{_step_impl.1} parent=1 // pred_region
      _
    $region45: #{_step_impl.1} parent=1 // pred_fallthru
      _
    // Predicated region
    $region46: #{_step_impl.1} parent=1 // pred_check
      _
    $region47: #{_step_impl.1} parent=1 // pred_check_branch
      %798 = sbr.rel (0) target = $region49
    $region48: #{_step_impl.1} parent=1 // pred_region
      _
    $region49: #{_step_impl.1} parent=1 // pred_fallthru
      _
    %799 = vsyncpa [#allocation4], 1
    %800 = vsyncpa [#allocation6], 1

</llo_original>
